<compile_context>
chip_gen: v7x
topology: tpu7x:2x2x1
jax: 0.10.0
libtpu: 0.0.40
codegen_flags: <defaults>
</compile_context>

<pallas_src>
import functools

import jax
import jax.numpy as jnp
from jax.experimental import pallas as pl
from jax.experimental.pallas import tpu as pltpu


# ---------------------------------------------------------------------------
# Kernel
# ---------------------------------------------------------------------------
def actor_critic_kernel(x_ref, w_ref, v_ref, out_ref, *, out_actor):
    n_in = x_ref.shape[1]
    x = x_ref[...]                                             # (B, n_in) f32

    # F.normalize(x, dim=0): x / max(||col||_2, 1e-12)  ==  x * rsqrt(max(ss, 1e-24))
    sumsq = jnp.sum(x * x, axis=0, keepdims=True)
    xn = x * jax.lax.rsqrt(jnp.maximum(sumsq, 1e-24))

    # Packed bias / vector rows (each (1, 128)).
    b1 = v_ref[0:1, :]
    b2 = v_ref[1:2, :]
    bh = v_ref[2:3, :]          # fused head bias (actor | l3 | bias-trick col)
    wc = v_ref[3:4, :]          # critic weights at l3 cols + critic bias at trick col

    # y = relu(l1(x)); y = relu(l2(y))   (hidden dims zero-padded to 128 lanes)
    y = jnp.maximum(
        jnp.dot(xn, w_ref[0:n_in, 0:128], preferred_element_type=jnp.float32) + b1,
        0.0)
    y = jnp.maximum(
        jnp.dot(y, w_ref[:, 128:256], preferred_element_type=jnp.float32) + b2,
        0.0)

    # Fused head: cols [0, OA) actor logits, [OA, OA+L3) l3 pre-activation,
    # col OA+L3 is the bias-trick column (zero weights, bias 1.0).
    h = jnp.dot(y, w_ref[:, 256:384], preferred_element_type=jnp.float32) + bh

    # actorO = log_softmax(actor(y), dim=0)  -- columnwise over the batch axis.
    # Computed over all 128 columns (padding columns are harmless, dropped later).
    m = jnp.max(h, axis=0, keepdims=True)
    lse = m + jnp.log(jnp.sum(jnp.exp(h - m), axis=0, keepdims=True))
    lsm = h - lse

    # criticI = relu(l3(y.detach())); criticO = 10 * tanh(critic(criticI))
    # N=1 head done on the VPU/XLU: relu(h) dotted with the packed wc row.
    # actor columns contribute 0 (wc is 0 there); the bias-trick column has
    # relu(h)=1 and wc=critic_bias, folding the bias into the reduce.
    crit = 10.0 * jnp.tanh(
        jnp.sum(jnp.maximum(h, 0.0) * wc, axis=1, keepdims=True))

    # Single lane-dense output slab: cols [0, OA) actor, cols >= OA carry the
    # (broadcast) critic scalar; the wrapper slices col OA as the critic output.
    lane = jax.lax.broadcasted_iota(jnp.int32, out_ref.shape, 1)
    out_ref[...] = jnp.where(lane < out_actor, lsm, crit)


# ---------------------------------------------------------------------------
# One-time packing of PyTorch-layout params into two slabs.
# ---------------------------------------------------------------------------
def pack_params(params, n_in):
    l1_w, l1_b = params["l1_w"], params["l1_b"]        # (L1, n_in), (L1,)
    l2_w, l2_b = params["l2_w"], params["l2_b"]        # (L2, L1),  (L2,)
    a_w, a_b = params["actor_w"], params["actor_b"]    # (OA, L2),  (OA,)
    l3_w, l3_b = params["l3_w"], params["l3_b"]        # (L3, L2),  (L3,)
    c_w, c_b = params["critic_w"], params["critic_b"]  # (OC, L3),  (OC,)

    L1, L2, OA, L3, OC = (l1_w.shape[0], l2_w.shape[0], a_w.shape[0],
                          l3_w.shape[0], c_w.shape[0])
    # TODO(synk): the packed VPU critic path assumes a scalar critic head.
    assert OC == 1, "packed kernel supports outputCritic == 1"
    assert n_in <= 128 and L1 <= 128 and L2 <= 128 and OA + L3 + 1 <= 128

    # Weight slab: three 128-lane blocks [ W1 | W2 | W_head ], K padded to 128.
    W = jnp.zeros((128, 3 * 128), jnp.float32)
    W = W.at[:n_in, 0:L1].set(l1_w.T)
    W = W.at[:L1, 128:128 + L2].set(l2_w.T)
    W = W.at[:L2, 256:256 + OA].set(a_w.T)
    W = W.at[:L2, 256 + OA:256 + OA + L3].set(l3_w.T)
    # bias-trick column (index OA+L3 of the head block) keeps all-zero weights.

    # Bias / vector slab (rows: b1, b2, b_head, wc; rest zero).
    V = jnp.zeros((8, 128), jnp.float32)
    V = V.at[0, :L1].set(l1_b)
    V = V.at[1, :L2].set(l2_b)
    V = V.at[2, :OA].set(a_b)
    V = V.at[2, OA:OA + L3].set(l3_b)
    V = V.at[2, OA + L3].set(1.0)               # bias-trick column -> relu(h)=1
    V = V.at[3, OA:OA + L3].set(c_w[0])         # critic weights aligned to l3 cols
    V = V.at[3, OA + L3].set(c_b[0])            # critic bias via the trick column
    return W, V


# ---------------------------------------------------------------------------
# Forward wrapper
# ---------------------------------------------------------------------------
def actor_critic_forward(x, W, V, *, out_actor, out_critic=1):
    """x: (B, n_in) f32.  W, V: packed slabs from pack_params."""
    B = x.shape[0]
    vmem = pl.BlockSpec(memory_space=pltpu.MemorySpace.VMEM)
    out = pl.pallas_call(
        functools.partial(actor_critic_kernel, out_actor=out_actor),
        out_shape=jax.ShapeDtypeStruct((B, 128), jnp.float32),
        in_specs=[vmem, vmem, vmem],
        out_specs=vmem,
    )(x, W, V)
    return out[:, :out_actor], out[:, out_actor:out_actor + out_critic]


# ---------------------------------------------------------------------------
# Deterministic init + pure-JAX reference
# ---------------------------------------------------------------------------
def init_params(key, n_in, l1, l2, l3, out_actor, out_critic):
    """Mimics nn.Linear's U(-1/sqrt(fan_in), 1/sqrt(fan_in)) init."""
    def linear(key, fan_in, fan_out):
        kw, kb = jax.random.split(key)
        bound = 1.0 / jnp.sqrt(float(fan_in))
        w = jax.random.uniform(kw, (fan_out, fan_in), jnp.float32, -bound, bound)
        b = jax.random.uniform(kb, (fan_out,), jnp.float32, -bound, bound)
        return w, b

    ks = jax.random.split(key, 5)
    p = {}
    p["l1_w"], p["l1_b"] = linear(ks[0], n_in, l1)
    p["l2_w"], p["l2_b"] = linear(ks[1], l1, l2)
    p["actor_w"], p["actor_b"] = linear(ks[2], l2, out_actor)
    p["l3_w"], p["l3_b"] = linear(ks[3], l2, l3)
    p["critic_w"], p["critic_b"] = linear(ks[4], l3, out_critic)
    return p


def reference_forward(x, params):
    """Pure-JAX reference mirroring the PyTorch forward exactly."""
    xn = x / jnp.maximum(jnp.sqrt(jnp.sum(x * x, axis=0, keepdims=True)), 1e-12)
    y = jax.nn.relu(xn @ params["l1_w"].T + params["l1_b"])
    y = jax.nn.relu(y @ params["l2_w"].T + params["l2_b"])
    actor_o = jax.nn.log_softmax(y @ params["actor_w"].T + params["actor_b"], axis=0)
    ci = jax.nn.relu(y @ params["l3_w"].T + params["l3_b"])
    critic_o = 10.0 * jnp.tanh(ci @ params["critic_w"].T + params["critic_b"])
    return actor_o, critic_o


if __name__ == "__main__":
    # ActorCritic(input=32, layer1=64, layer2=64, layer3=32, outputActor=8, outputCritic=1)
    B, N_IN, L1, L2, L3, OUT_A, OUT_C = 8, 32, 64, 64, 32, 8, 1

    key = jax.random.PRNGKey(0)
    k_params, k_x = jax.random.split(key)
    params = init_params(k_params, N_IN, L1, L2, L3, OUT_A, OUT_C)
    x = jax.random.normal(k_x, (B, N_IN), jnp.float32)

    # Pack once (hoisted out of the per-call path).
    W, V = pack_params(params, N_IN)
    W, V = jax.block_until_ready((W, V))

    actor_o, critic_o = actor_critic_forward(x, W, V, out_actor=OUT_A, out_critic=OUT_C)
    jax.block_until_ready((actor_o, critic_o))

    # Sanity check against the pure-JAX reference.
    ref_a, ref_c = reference_forward(x, params)
    assert actor_o.shape == (B, OUT_A) and critic_o.shape == (B, OUT_C)
    assert jnp.allclose(actor_o, ref_a, atol=1e-4, rtol=1e-4)
    assert jnp.allclose(critic_o, ref_c, atol=1e-4, rtol=1e-4)

    print("KERNEL_OK")
</pallas_src>

<mosaic_0001>
module attributes {stable_mosaic.version = 11 : i64} {
  func.func @actor_critic_kernel(%arg0: memref<8x32xf32, #tpu.memory_space<vmem>>, %arg1: memref<128x384xf32, #tpu.memory_space<vmem>>, %arg2: memref<8x128xf32, #tpu.memory_space<vmem>>, %arg3: memref<8x128xf32, #tpu.memory_space<vmem>>) attributes {dimension_semantics = [], scalar_prefetch = 0 : i64, scratch_operands = 0 : i64, tpu.core_type = #tpu.core_type<tc>} {
    %c0 = arith.constant 0 : index
    %c0_0 = arith.constant 0 : index
    %0 = vector.load %arg0[%c0, %c0_0] : memref<8x32xf32, #tpu.memory_space<vmem>>, vector<8x32xf32>
    %1 = arith.mulf %0, %0 : vector<8x32xf32>
    %cst = arith.constant dense<0.000000e+00> : vector<32xf32>
    %2 = vector.multi_reduction <add>, %1, %cst [0] : vector<8x32xf32> to vector<32xf32>
    %3 = vector.shape_cast %2 : vector<32xf32> to vector<1x32xf32>
    %cst_1 = arith.constant 1.000000e-24 : f32
    %4 = vector.broadcast %cst_1 : f32 to vector<1x32xf32>
    %5 = arith.maximumf %3, %4 : vector<1x32xf32>
    %6 = math.rsqrt %5 : vector<1x32xf32>
    %7 = vector.broadcast %6 : vector<1x32xf32> to vector<8x32xf32>
    %8 = arith.mulf %0, %7 : vector<8x32xf32>
    %c0_2 = arith.constant 0 : index
    %c0_3 = arith.constant 0 : index
    %9 = vector.load %arg2[%c0_2, %c0_3] : memref<8x128xf32, #tpu.memory_space<vmem>>, vector<1x128xf32>
    %c1 = arith.constant 1 : index
    %c0_4 = arith.constant 0 : index
    %10 = vector.load %arg2[%c1, %c0_4] : memref<8x128xf32, #tpu.memory_space<vmem>>, vector<1x128xf32>
    %c2 = arith.constant 2 : index
    %c0_5 = arith.constant 0 : index
    %11 = vector.load %arg2[%c2, %c0_5] : memref<8x128xf32, #tpu.memory_space<vmem>>, vector<1x128xf32>
    %c3 = arith.constant 3 : index
    %c0_6 = arith.constant 0 : index
    %12 = vector.load %arg2[%c3, %c0_6] : memref<8x128xf32, #tpu.memory_space<vmem>>, vector<1x128xf32>
    %c0_7 = arith.constant 0 : index
    %c0_8 = arith.constant 0 : index
    %13 = vector.load %arg1[%c0_7, %c0_8] : memref<128x384xf32, #tpu.memory_space<vmem>>, vector<32x128xf32>
    %cst_9 = arith.constant dense<0.000000e+00> : vector<8x128xf32>
    %14 = tpu.matmul %8, %13, %cst_9 {dimension_numbers = #tpu.dot_dimension_numbers<[1], [0], [0], [1], [0, 0, 1, 1], [], []>} : vector<8x32xf32>, vector<32x128xf32>, vector<8x128xf32> -> vector<8x128xf32>
    %15 = vector.broadcast %9 : vector<1x128xf32> to vector<8x128xf32>
    %16 = arith.addf %14, %15 : vector<8x128xf32>
    %cst_10 = arith.constant 0.000000e+00 : f32
    %17 = vector.broadcast %cst_10 : f32 to vector<8x128xf32>
    %18 = arith.maximumf %16, %17 : vector<8x128xf32>
    %c0_11 = arith.constant 0 : index
    %c128 = arith.constant 128 : index
    %19 = vector.load %arg1[%c0_11, %c128] : memref<128x384xf32, #tpu.memory_space<vmem>>, vector<128x128xf32>
    %cst_12 = arith.constant dense<0.000000e+00> : vector<8x128xf32>
    %20 = tpu.matmul %18, %19, %cst_12 {dimension_numbers = #tpu.dot_dimension_numbers<[1], [0], [0], [1], [0, 0, 1, 1], [], []>} : vector<8x128xf32>, vector<128x128xf32>, vector<8x128xf32> -> vector<8x128xf32>
    %21 = vector.broadcast %10 : vector<1x128xf32> to vector<8x128xf32>
    %22 = arith.addf %20, %21 : vector<8x128xf32>
    %cst_13 = arith.constant 0.000000e+00 : f32
    %23 = vector.broadcast %cst_13 : f32 to vector<8x128xf32>
    %24 = arith.maximumf %22, %23 : vector<8x128xf32>
    %c0_14 = arith.constant 0 : index
    %c256 = arith.constant 256 : index
    %25 = vector.load %arg1[%c0_14, %c256] : memref<128x384xf32, #tpu.memory_space<vmem>>, vector<128x128xf32>
    %cst_15 = arith.constant dense<0.000000e+00> : vector<8x128xf32>
    %26 = tpu.matmul %24, %25, %cst_15 {dimension_numbers = #tpu.dot_dimension_numbers<[1], [0], [0], [1], [0, 0, 1, 1], [], []>} : vector<8x128xf32>, vector<128x128xf32>, vector<8x128xf32> -> vector<8x128xf32>
    %27 = vector.broadcast %11 : vector<1x128xf32> to vector<8x128xf32>
    %28 = arith.addf %26, %27 : vector<8x128xf32>
    %cst_16 = arith.constant dense<0xFF800000> : vector<128xf32>
    %29 = vector.multi_reduction <maximumf>, %28, %cst_16 [0] : vector<8x128xf32> to vector<128xf32>
    %30 = vector.shape_cast %29 : vector<128xf32> to vector<1x128xf32>
    %31 = vector.broadcast %30 : vector<1x128xf32> to vector<8x128xf32>
    %32 = arith.subf %28, %31 : vector<8x128xf32>
    %33 = math.exp %32 : vector<8x128xf32>
    %cst_17 = arith.constant dense<0.000000e+00> : vector<128xf32>
    %34 = vector.multi_reduction <add>, %33, %cst_17 [0] : vector<8x128xf32> to vector<128xf32>
    %35 = vector.shape_cast %34 : vector<128xf32> to vector<1x128xf32>
    %36 = math.log %35 : vector<1x128xf32>
    %37 = arith.addf %30, %36 : vector<1x128xf32>
    %38 = vector.broadcast %37 : vector<1x128xf32> to vector<8x128xf32>
    %39 = arith.subf %28, %38 : vector<8x128xf32>
    %cst_18 = arith.constant 0.000000e+00 : f32
    %40 = vector.broadcast %cst_18 : f32 to vector<8x128xf32>
    %41 = arith.maximumf %28, %40 : vector<8x128xf32>
    %42 = vector.broadcast %12 : vector<1x128xf32> to vector<8x128xf32>
    %43 = arith.mulf %41, %42 : vector<8x128xf32>
    %cst_19 = arith.constant dense<0.000000e+00> : vector<8xf32>
    %44 = vector.multi_reduction <add>, %43, %cst_19 [1] : vector<8x128xf32> to vector<8xf32>
    %45 = vector.shape_cast %44 : vector<8xf32> to vector<8x1xf32>
    %46 = math.tanh %45 : vector<8x1xf32>
    %cst_20 = arith.constant 1.000000e+01 : f32
    %47 = vector.broadcast %cst_20 : f32 to vector<8x1xf32>
    %48 = arith.mulf %47, %46 : vector<8x1xf32>
    %49 = tpu.iota {dimensions = array<i32: 1>} : vector<8x128xi32>
    %c8_i32 = arith.constant 8 : i32
    %50 = vector.broadcast %c8_i32 : i32 to vector<8x128xi32>
    %51 = arith.cmpi slt, %49, %50 : vector<8x128xi32>
    %52 = vector.shape_cast %48 : vector<8x1xf32> to vector<8x1xf32>
    %53 = vector.broadcast %52 : vector<8x1xf32> to vector<8x128xf32>
    %54 = arith.select %51, %39, %53 : vector<8x128xi1>, vector<8x128xf32>
    %c0_21 = arith.constant 0 : index
    %c0_22 = arith.constant 0 : index
    %55 = vector.load %arg3[%c0_21, %c0_22] : memref<8x128xf32, #tpu.memory_space<vmem>>, vector<8x128xf32>
    tpu.vector_store %arg3[%c0_21, %c0_22], %54 {strides = array<i32>} : memref<8x128xf32, #tpu.memory_space<vmem>>, vector<8x128xf32>,
    return
  }
}

</mosaic_0001>

<llo_original>
// kernel: tpu_custom_call.1
$region0: #{tpu_custom_call.1}
  #allocation0 [shape = 'u32[]', space=smem, size = 0x4, offset = 0x4, fixed_abs, tag = 'smem constant byte address 0x4 - core index']
  #allocation1 [shape = 'u32[144,128]{1,0:T(1,128)}', space=vmem, size = 0x12000, scoped, tag = 'internal scratch']
  %s0 = inlined_call_operand.hbm [shape: f32[8,32], index: 0, kind: input, shape index: {}]
  %s1 = inlined_call_operand.hbm [shape: f32[128,384], index: 1, kind: input, shape index: {}]
  %s2 = inlined_call_operand.hbm [shape: f32[8,128], index: 2, kind: input, shape index: {}]
  %s3 = inlined_call_operand.hbm [shape: f32[8,128], index: 3, kind: output, shape index: {}]
  %s4 = sld [smem:[#allocation0]]
  $region34: #{tpu_custom_call.1} parent=0
    _
  %s6 = ssub.s32 1, %s4
  %s7 = scalar_select 0, %s6, %s4
  $region1: #{tpu_custom_call.1} parent=0
    #allocation2 [shape = 'u8[4096]{0}', space=vmem, size = 0x1000, scoped, tag = 'input window, operand 0, single buffered']
    #allocation3 [shape = 's32[1]{0}', space=sflag, size = 0x4, scoped, tag = 'scoped memory for tpu_custom_call.1']
    #allocation4 [shape = 's32[1]{0}', space=sflag, size = 0x4, scoped, tag = 'scoped memory for tpu_custom_call.1']
    #allocation5 [shape = 'u8[196608]{0}', space=vmem, size = 0x30000, scoped, tag = 'input window, operand 1, single buffered']
    #allocation6 [shape = 's32[1]{0}', space=sflag, size = 0x4, scoped, tag = 'scoped memory for tpu_custom_call.1']
    #allocation7 [shape = 'u8[4096]{0}', space=vmem, size = 0x1000, scoped, tag = 'input window, operand 2, single buffered']
    #allocation8 [shape = 'u8[4096]{0}', space=vmem, size = 0x1000, scoped, tag = 'output window, operand 0, single buffered']
    %8 = vsyncpa [#allocation3], 0
    %9 = vsyncpa [#allocation6], 0
    %10 = vsyncpa [#allocation4], 0
    // Predicated region
    $region2: #{tpu_custom_call.1} parent=1 // pred_check
      _
    $region3: #{tpu_custom_call.1} parent=1 // pred_check_branch
      %12 = sbr.rel (0) target = $region5
    $region4: #{tpu_custom_call.1} parent=1 // pred_region
      %s14 = ssub.s32 128, 128
      %15 = vsyncadd [#allocation3], %s14
      %s17 = sshll.u32 [#allocation2], 4
      %s18 = int_to_ptr.vmem [resolvable:$true] %s17
      %20 = dma.hbm_to_vmem [thread:$0]  %s0, 128, %s18, [#allocation3]
    $region5: #{tpu_custom_call.1} parent=1 // pred_fallthru
      _
    // Predicated region
    $region6: #{tpu_custom_call.1} parent=1 // pred_check
      _
    $region7: #{tpu_custom_call.1} parent=1 // pred_check_branch
      %22 = sbr.rel (0) target = $region9
    $region8: #{tpu_custom_call.1} parent=1 // pred_region
      %s24 = ssub.s32 6144, 6144
      %25 = vsyncadd [#allocation6], %s24
      %s26 = sshll.u32 [#allocation5], 4
      %s27 = int_to_ptr.vmem [resolvable:$true] %s26
      %32 = dma.hbm_to_vmem [thread:$0]  %s1, 6144, %s27, [#allocation6], 384, 384, 24
    $region9: #{tpu_custom_call.1} parent=1 // pred_fallthru
      _
    // Predicated region
    $region10: #{tpu_custom_call.1} parent=1 // pred_check
      _
    $region11: #{tpu_custom_call.1} parent=1 // pred_check_branch
      %34 = sbr.rel (0) target = $region13
    $region12: #{tpu_custom_call.1} parent=1 // pred_region
      %s36 = ssub.s32 128, 128
      %37 = vsyncadd [#allocation6], %s36
      %s39 = sshll.u32 [#allocation7], 4
      %s40 = int_to_ptr.vmem [resolvable:$true] %s39
      %42 = dma.hbm_to_vmem [thread:$0]  %s2, 128, %s40, [#allocation6]
    $region13: #{tpu_custom_call.1} parent=1 // pred_fallthru
      _
    // Predicated region
    $region14: #{tpu_custom_call.1} parent=1 // pred_check
      _
    $region15: #{tpu_custom_call.1} parent=1 // pred_check_branch
      %44 = sbr.rel (0) target = $region17
    $region16: #{tpu_custom_call.1} parent=1 // pred_region
      %45 = dma.done [#allocation3], 128
    $region17: #{tpu_custom_call.1} parent=1 // pred_fallthru
      _
    // Predicated region
    $region18: #{tpu_custom_call.1} parent=1 // pred_check
      _
    $region19: #{tpu_custom_call.1} parent=1 // pred_check_branch
      %47 = sbr.rel (0) target = $region21
    $region20: #{tpu_custom_call.1} parent=1 // pred_region
      %48 = dma.done [#allocation6], 6144
    $region21: #{tpu_custom_call.1} parent=1 // pred_fallthru
      _
    // Predicated region
    $region22: #{tpu_custom_call.1} parent=1 // pred_check
      _
    $region23: #{tpu_custom_call.1} parent=1 // pred_check_branch
      %50 = sbr.rel (0) target = $region25
    $region24: #{tpu_custom_call.1} parent=1 // pred_region
      %51 = dma.done [#allocation6], 128
    $region25: #{tpu_custom_call.1} parent=1 // pred_fallthru
      _
    %v52 = vld [vmem:[#allocation2] sm:$0xff]
    %v53 = vmul.f32 %v52, %v52
    %vm54 = vcmask 261120
    %v55 = vsel %vm54, %v53, 0.0
    %v56 = vrot.slane %v55, 4
    %v57 = vadd.f32 %v55, %v56
    %v58 = vrot.slane %v57, 2
    %v59 = vadd.f32 %v57, %v58
    %v60 = vrot.slane %v59, 1
    %v61 = vadd.f32 %v59, %v60
    %v62 = vmax.f32 %v61, 1e-24
    %v63 = vrsqrt.pop %v62
    %v64 = vmul.f32 %v52, %v63
    %v65 = vld [vmem:[#allocation7] sm:$0x1]
    %v66 = vld [vmem:[#allocation7 + $0x1] sm:$0x1]
    %v67 = vld [vmem:[#allocation7 + $0x2] sm:$0x1]
    %v68 = vld [vmem:[#allocation7 + $0x3] sm:$0x1]
    %v69 = vld [vmem:[#allocation5] sm:$0xff]
    %v70 = vld [vmem:[#allocation5 + $0x18] sm:$0xff]
    %v71 = vld [vmem:[#allocation5 + $0x30] sm:$0xff]
    %v72 = vld [vmem:[#allocation5 + $0x48] sm:$0xff]
    %v73 = vlaneseq
    %v74 = vshrl.u32 %v73, 7
    %v75 = vsub.s32 0, %v74
    %v76 = vrot.slane %v65, %v75
    %v78 = vsel %vm54, %v64, 0
    %80 = vmatprep.subr.mxu0 0.0
    %81 = vmatpush1.msra.mxu0 %v69
    %82 = vmatprep.subr.mxu0 0.0
    %83 = vmatpush1.msra.mxu0 %v70
    %84 = vmatprep.subr.mxu0 0.0
    %85 = vmatpush1.msra.mxu0 %v71
    %86 = vmatprep.subr.mxu0 0.0
    %87 = vmatpush1.msra.mxu0 %v72
    %88 = vmatprep.subr.mxu0 0.0
    %89 = vmatpush1.msra.mxu0 0.0
    %90 = vmatprep.subr.mxu0 0.0
    %91 = vmatpush1.msra.mxu0 0.0
    %92 = vmatprep.subr.mxu0 0.0
    %93 = vmatpush1.msra.mxu0 0.0
    %94 = vmatprep.subr.mxu0 0.0
    %95 = vmatpush1.msra.mxu0 0.0
    %96 = vmatprep.subr.mxu0 0.0
    %97 = vmatpush1.msra.mxu0 0.0
    %98 = vmatprep.subr.mxu0 0.0
    %99 = vmatpush1.msra.mxu0 0.0
    %100 = vmatprep.subr.mxu0 0.0
    %101 = vmatpush1.msra.mxu0 0.0
    %102 = vmatprep.subr.mxu0 0.0
    %103 = vmatpush1.msra.mxu0 0.0
    %104 = vmatprep.subr.mxu0 0.0
    %105 = vmatpush1.msra.mxu0 0.0
    %106 = vmatprep.subr.mxu0 0.0
    %107 = vmatpush1.msra.mxu0 0.0
    %108 = vmatprep.subr.mxu0 0.0
    %109 = vmatpush1.msra.mxu0 0.0
    %110 = vmatprep.subr.mxu0 0.0
    %111 = vmatpush1.msra.mxu0 0.0
    %112 = vmatprep.subr.mxu0 0.0
    %113 = vmatpush1.msra.mxu0 0.0
    %114 = vmatprep.subr.mxu0 0.0
    %115 = vmatpush1.msra.mxu0 0.0
    %116 = vmatprep.subr.mxu0 0.0
    %117 = vmatpush1.msra.mxu0 0.0
    %118 = vmatprep.subr.mxu0 0.0
    %119 = vmatpush1.msra.mxu0 0.0
    %120 = vmatprep.subr.mxu0 0.0
    %121 = vmatpush1.msra.mxu0 0.0
    %122 = vmatprep.subr.mxu0 0.0
    %123 = vmatpush1.msra.mxu0 0.0
    %124 = vmatprep.subr.mxu0 0.0
    %125 = vmatpush1.msra.mxu0 0.0
    %126 = vmatprep.subr.mxu0 0.0
    %127 = vmatpush1.msra.mxu0 0.0
    %128 = vmatprep.subr.mxu0 0.0
    %129 = vmatpush1.msra.mxu0 0.0
    %130 = vmatprep.subr.mxu0 0.0
    %131 = vmatpush1.msra.mxu0 0.0
    %132 = vmatprep.subr.mxu0 0.0
    %133 = vmatpush1.msra.mxu0 0.0
    %134 = vmatprep.subr.mxu0 0.0
    %135 = vmatpush1.msra.mxu0 0.0
    %136 = vmatprep.subr.mxu0 0.0
    %137 = vmatpush1.msra.mxu0 0.0
    %138 = vmatprep.subr.mxu0 0.0
    %139 = vmatpush1.msra.mxu0 0.0
    %140 = vmatprep.subr.mxu0 0.0
    %141 = vmatpush1.msra.mxu0 0.0
    %142 = vmatprep.subr.mxu0 0.0
    %143 = vmatpush1.msra.mxu0 0.0
    %144 = vmatprep.mubr.f32.mxu0 0.0
    %145 = vmatmul.mubr.f32.gmra.mrb[0].mxu0 %v78
    %v146 = vpop.f32.mrb[0].mxu0
    %v147 = vadd.f32 %v76, %v146
    %v148 = vpop.f32.mrb[0].mxu0
    %149 = vdwg.mxu0
    %v150 = vmax.f32 %v147, 0.0
    %v151 = vld [vmem:[#allocation5 + $0x8] sm:$0xff]
    %v152 = vld [vmem:[#allocation5 + $0x20] sm:$0xff]
    %v153 = vld [vmem:[#allocation5 + $0x38] sm:$0xff]
    %v154 = vld [vmem:[#allocation5 + $0x50] sm:$0xff]
    %v155 = vld [vmem:[#allocation5 + $0x68] sm:$0xff]
    %v156 = vld [vmem:[#allocation5 + $0x80] sm:$0xff]
    %v157 = vld [vmem:[#allocation5 + $0x98] sm:$0xff]
    %v158 = vld [vmem:[#allocation5 + $0xb0] sm:$0xff]
    %v159 = vld [vmem:[#allocation5 + $0xc8] sm:$0xff]
    %v160 = vld [vmem:[#allocation5 + $0xe0] sm:$0xff]
    %v161 = vld [vmem:[#allocation5 + $0xf8] sm:$0xff]
    %v162 = vld [vmem:[#allocation5 + $0x110] sm:$0xff]
    %v163 = vld [vmem:[#allocation5 + $0x128] sm:$0xff]
    %v164 = vld [vmem:[#allocation5 + $0x140] sm:$0xff]
    %v165 = vld [vmem:[#allocation5 + $0x158] sm:$0xff]
    %v166 = vld [vmem:[#allocation5 + $0x170] sm:$0xff]
    %v167 = vlaneseq
    %v168 = vshrl.u32 %v167, 7
    %v169 = vsub.s32 0, %v168
    %v170 = vrot.slane %v66, %v169
    %171 = vmatprep.subr.mxu0 0.0
    %172 = vmatpush1.msra.mxu0 %v151
    %173 = vmatprep.subr.mxu0 0.0
    %174 = vmatpush1.msra.mxu0 %v152
    %175 = vmatprep.subr.mxu0 0.0
    %176 = vmatpush1.msra.mxu0 %v153
    %177 = vmatprep.subr.mxu0 0.0
    %178 = vmatpush1.msra.mxu0 %v154
    %179 = vmatprep.subr.mxu0 0.0
    %180 = vmatpush1.msra.mxu0 %v155
    %181 = vmatprep.subr.mxu0 0.0
    %182 = vmatpush1.msra.mxu0 %v156
    %183 = vmatprep.subr.mxu0 0.0
    %184 = vmatpush1.msra.mxu0 %v157
    %185 = vmatprep.subr.mxu0 0.0
    %186 = vmatpush1.msra.mxu0 %v158
    %187 = vmatprep.subr.mxu0 0.0
    %188 = vmatpush1.msra.mxu0 %v159
    %189 = vmatprep.subr.mxu0 0.0
    %190 = vmatpush1.msra.mxu0 %v160
    %191 = vmatprep.subr.mxu0 0.0
    %192 = vmatpush1.msra.mxu0 %v161
    %193 = vmatprep.subr.mxu0 0.0
    %194 = vmatpush1.msra.mxu0 %v162
    %195 = vmatprep.subr.mxu0 0.0
    %196 = vmatpush1.msra.mxu0 %v163
    %197 = vmatprep.subr.mxu0 0.0
    %198 = vmatpush1.msra.mxu0 %v164
    %199 = vmatprep.subr.mxu0 0.0
    %200 = vmatpush1.msra.mxu0 %v165
    %201 = vmatprep.subr.mxu0 0.0
    %202 = vmatpush1.msra.mxu0 %v166
    %203 = vmatprep.subr.mxu0 0.0
    %204 = vmatpush1.msra.mxu0 0.0
    %205 = vmatprep.subr.mxu0 0.0
    %206 = vmatpush1.msra.mxu0 0.0
    %207 = vmatprep.subr.mxu0 0.0
    %208 = vmatpush1.msra.mxu0 0.0
    %209 = vmatprep.subr.mxu0 0.0
    %210 = vmatpush1.msra.mxu0 0.0
    %211 = vmatprep.subr.mxu0 0.0
    %212 = vmatpush1.msra.mxu0 0.0
    %213 = vmatprep.subr.mxu0 0.0
    %214 = vmatpush1.msra.mxu0 0.0
    %215 = vmatprep.subr.mxu0 0.0
    %216 = vmatpush1.msra.mxu0 0.0
    %217 = vmatprep.subr.mxu0 0.0
    %218 = vmatpush1.msra.mxu0 0.0
    %219 = vmatprep.subr.mxu0 0.0
    %220 = vmatpush1.msra.mxu0 0.0
    %221 = vmatprep.subr.mxu0 0.0
    %222 = vmatpush1.msra.mxu0 0.0
    %223 = vmatprep.subr.mxu0 0.0
    %224 = vmatpush1.msra.mxu0 0.0
    %225 = vmatprep.subr.mxu0 0.0
    %226 = vmatpush1.msra.mxu0 0.0
    %227 = vmatprep.subr.mxu0 0.0
    %228 = vmatpush1.msra.mxu0 0.0
    %229 = vmatprep.subr.mxu0 0.0
    %230 = vmatpush1.msra.mxu0 0.0
    %231 = vmatprep.subr.mxu0 0.0
    %232 = vmatpush1.msra.mxu0 0.0
    %233 = vmatprep.subr.mxu0 0.0
    %234 = vmatpush1.msra.mxu0 0.0
    %235 = vmatprep.mubr.f32.mxu0 0.0
    %236 = vmatmul.mubr.f32.gmra.mrb[0].mxu0 %v150
    %v237 = vpop.f32.mrb[0].mxu0
    %v238 = vadd.f32 %v170, %v237
    %v239 = vpop.f32.mrb[0].mxu0
    %240 = vdwg.mxu0
    %v241 = vmax.f32 %v238, 0.0
    %v242 = vld [vmem:[#allocation5 + $0x10] sm:$0xff]
    %v243 = vld [vmem:[#allocation5 + $0x28] sm:$0xff]
    %v244 = vld [vmem:[#allocation5 + $0x40] sm:$0xff]
    %v245 = vld [vmem:[#allocation5 + $0x58] sm:$0xff]
    %v246 = vld [vmem:[#allocation5 + $0x70] sm:$0xff]
    %v247 = vld [vmem:[#allocation5 + $0x88] sm:$0xff]
    %v248 = vld [vmem:[#allocation5 + $0xa0] sm:$0xff]
    %v249 = vld [vmem:[#allocation5 + $0xb8] sm:$0xff]
    %v250 = vld [vmem:[#allocation5 + $0xd0] sm:$0xff]
    %v251 = vld [vmem:[#allocation5 + $0xe8] sm:$0xff]
    %v252 = vld [vmem:[#allocation5 + $0x100] sm:$0xff]
    %v253 = vld [vmem:[#allocation5 + $0x118] sm:$0xff]
    %v254 = vld [vmem:[#allocation5 + $0x130] sm:$0xff]
    %v255 = vld [vmem:[#allocation5 + $0x148] sm:$0xff]
    %v256 = vld [vmem:[#allocation5 + $0x160] sm:$0xff]
    %v257 = vld [vmem:[#allocation5 + $0x178] sm:$0xff]
    %v258 = vlaneseq
    %v259 = vshrl.u32 %v258, 7
    %v260 = vsub.s32 0, %v259
    %v261 = vrot.slane %v67, %v260
    %262 = vmatprep.subr.mxu0 0.0
    %263 = vmatpush1.msra.mxu0 %v242
    %264 = vmatprep.subr.mxu0 0.0
    %265 = vmatpush1.msra.mxu0 %v243
    %266 = vmatprep.subr.mxu0 0.0
    %267 = vmatpush1.msra.mxu0 %v244
    %268 = vmatprep.subr.mxu0 0.0
    %269 = vmatpush1.msra.mxu0 %v245
    %270 = vmatprep.subr.mxu0 0.0
    %271 = vmatpush1.msra.mxu0 %v246
    %272 = vmatprep.subr.mxu0 0.0
    %273 = vmatpush1.msra.mxu0 %v247
    %274 = vmatprep.subr.mxu0 0.0
    %275 = vmatpush1.msra.mxu0 %v248
    %276 = vmatprep.subr.mxu0 0.0
    %277 = vmatpush1.msra.mxu0 %v249
    %278 = vmatprep.subr.mxu0 0.0
    %279 = vmatpush1.msra.mxu0 %v250
    %280 = vmatprep.subr.mxu0 0.0
    %281 = vmatpush1.msra.mxu0 %v251
    %282 = vmatprep.subr.mxu0 0.0
    %283 = vmatpush1.msra.mxu0 %v252
    %284 = vmatprep.subr.mxu0 0.0
    %285 = vmatpush1.msra.mxu0 %v253
    %286 = vmatprep.subr.mxu0 0.0
    %287 = vmatpush1.msra.mxu0 %v254
    %288 = vmatprep.subr.mxu0 0.0
    %289 = vmatpush1.msra.mxu0 %v255
    %290 = vmatprep.subr.mxu0 0.0
    %291 = vmatpush1.msra.mxu0 %v256
    %292 = vmatprep.subr.mxu0 0.0
    %293 = vmatpush1.msra.mxu0 %v257
    %294 = vmatprep.subr.mxu0 0.0
    %295 = vmatpush1.msra.mxu0 0.0
    %296 = vmatprep.subr.mxu0 0.0
    %297 = vmatpush1.msra.mxu0 0.0
    %298 = vmatprep.subr.mxu0 0.0
    %299 = vmatpush1.msra.mxu0 0.0
    %300 = vmatprep.subr.mxu0 0.0
    %301 = vmatpush1.msra.mxu0 0.0
    %302 = vmatprep.subr.mxu0 0.0
    %303 = vmatpush1.msra.mxu0 0.0
    %304 = vmatprep.subr.mxu0 0.0
    %305 = vmatpush1.msra.mxu0 0.0
    %306 = vmatprep.subr.mxu0 0.0
    %307 = vmatpush1.msra.mxu0 0.0
    %308 = vmatprep.subr.mxu0 0.0
    %309 = vmatpush1.msra.mxu0 0.0
    %310 = vmatprep.subr.mxu0 0.0
    %311 = vmatpush1.msra.mxu0 0.0
    %312 = vmatprep.subr.mxu0 0.0
    %313 = vmatpush1.msra.mxu0 0.0
    %314 = vmatprep.subr.mxu0 0.0
    %315 = vmatpush1.msra.mxu0 0.0
    %316 = vmatprep.subr.mxu0 0.0
    %317 = vmatpush1.msra.mxu0 0.0
    %318 = vmatprep.subr.mxu0 0.0
    %319 = vmatpush1.msra.mxu0 0.0
    %320 = vmatprep.subr.mxu0 0.0
    %321 = vmatpush1.msra.mxu0 0.0
    %322 = vmatprep.subr.mxu0 0.0
    %323 = vmatpush1.msra.mxu0 0.0
    %324 = vmatprep.subr.mxu0 0.0
    %325 = vmatpush1.msra.mxu0 0.0
    %326 = vmatprep.mubr.f32.mxu0 0.0
    %327 = vmatmul.mubr.f32.gmra.mrb[0].mxu0 %v241
    %v328 = vpop.f32.mrb[0].mxu0
    %v329 = vadd.f32 %v261, %v328
    %v330 = vpop.f32.mrb[0].mxu0
    %331 = vdwg.mxu0
    %v332 = vrot.slane %v329, 4
    %v333 = vmax.f32 %v329, %v332
    %v334 = vrot.slane %v333, 2
    %v335 = vmax.f32 %v333, %v334
    %v336 = vrot.slane %v335, 1
    %v337 = vmax.f32 %v335, %v336
    %v338 = vsub.f32 %v329, %v337
    %v339 = vmul.f32 %v338, 1.442695
    %v340 = vpow.pop %v339
    %v341 = vrot.slane %v340, 4
    %v342 = vadd.f32 %v340, %v341
    %v343 = vrot.slane %v342, 2
    %v344 = vadd.f32 %v342, %v343
    %v345 = vrot.slane %v344, 1
    %v346 = vadd.f32 %v344, %v345
    %v347 = vlog2.pop %v346
    %v348 = vmul.f32 %v347, 0.6931472
    %v349 = vadd.f32 %v337, %v348
    %v350 = vsub.f32 %v329, %v349
    %v351 = vmax.f32 %v329, 0.0
    %v352 = vlaneseq
    %v353 = vshrl.u32 %v352, 7
    %v354 = vsub.s32 0, %v353
    %v355 = vrot.slane %v68, %v354
    %v356 = vmul.f32 %v351, %v355
    %357 = vadd.xlane.f32.xlu0 %v356
    %v358 = vpop.xlane.xlu0 %357
    %v359 = vtanh.pop %v358
    %v360 = vmul.f32 %v359, 10.0
    %v361 = vlaneseq
    %v362 = vand.u32 %v361, 127
    %vm363 = vcmp.lt.s32.totalorder %v362, 8
    %v364 = vsel %vm363, %v350, %v360
    %365 = vst [vmem:[#allocation8] sm:$0xff] %v364
    // Predicated region
    $region26: #{tpu_custom_call.1} parent=1 // pred_check
      _
    $region27: #{tpu_custom_call.1} parent=1 // pred_check_branch
      %367 = sbr.rel (0) target = $region29
    $region28: #{tpu_custom_call.1} parent=1 // pred_region
      %s369 = ssub.s32 128, 128
      %370 = vsyncadd [#allocation4], %s369
      %s372 = sshll.u32 [#allocation8], 4
      %s373 = int_to_ptr.vmem [resolvable:$true] %s372
      %375 = dma.vmem_to_hbm [thread:$0]  %s373, 128, %s3, [#allocation4]
    $region29: #{tpu_custom_call.1} parent=1 // pred_fallthru
      _
    // Predicated region
    $region30: #{tpu_custom_call.1} parent=1 // pred_check
      _
    $region31: #{tpu_custom_call.1} parent=1 // pred_check_branch
      %377 = sbr.rel (0) target = $region33
    $region32: #{tpu_custom_call.1} parent=1 // pred_region
      %378 = dma.done [#allocation4], 128
    $region33: #{tpu_custom_call.1} parent=1 // pred_fallthru
      _
    %379 = vsyncpa [#allocation3], 1
    %380 = vsyncpa [#allocation6], 1
    %381 = vsyncpa [#allocation4], 1

</llo_original>
